<compile_context>
chip_gen: v7x
topology: tpu7x:2x2x1
jax: 0.10.0
libtpu: 0.0.40
codegen_flags: <defaults>
</compile_context>

<pallas_src>
import functools
import math

import jax
import jax.numpy as jnp
from jax.experimental import pallas as pl
from jax.experimental.pallas import tpu as pltpu


def _channel_attention_kernel(x_ref, w1_ref, w2_ref, o_ref, max_sc, sum_sc, *,
                              hw_total):
    # x_ref block: (1, C, T)   -- channels on sublanes, spatial tile on lanes
    # w1_ref: (Ch, C); w2_ref: (C, Ch)
    # o_ref block: (1, C, 1)
    # max_sc / sum_sc: (C, 1) f32 running accumulators (persist across spatial steps)
    s = pl.program_id(1)

    @pl.when(s == 0)
    def _init():
        max_sc[...] = jnp.full_like(max_sc, -jnp.inf)
        sum_sc[...] = jnp.zeros_like(sum_sc)

    x = x_ref[0]                                                    # (C, T), native dtype
    tile_max = jnp.max(x, axis=-1, keepdims=True).astype(jnp.float32)        # (C, 1)
    tile_sum = jnp.sum(x, axis=-1, keepdims=True, dtype=jnp.float32)         # (C, 1)
    max_sc[...] = jnp.maximum(max_sc[...], tile_max)
    sum_sc[...] = sum_sc[...] + tile_sum

    @pl.when(s == pl.num_programs(1) - 1)
    def _finalize():
        C = max_sc.shape[0]
        mx = max_sc[...]                                            # (C, 1)  global max
        av = sum_sc[...] * (1.0 / hw_total)                         # (C, 1)  global avg

        # Stack [max | avg] into one (C, 2) operand (VPU select; no lane concat).
        col = jax.lax.broadcasted_iota(jnp.int32, (C, 2), 1)
        p = jnp.where(col == 0, mx, av)                             # (C, 2)

        w1 = w1_ref[...].astype(jnp.float32)                        # (Ch, C)
        w2 = w2_ref[...].astype(jnp.float32)                        # (C, Ch)

        h = jnp.dot(w1, p, preferred_element_type=jnp.float32)      # (Ch, 2)
        h = jnp.maximum(h, 0.0)                                     # ReLU(inplace)
        y2 = jnp.dot(w2, h, preferred_element_type=jnp.float32)     # (C, 2)
        y = jax.nn.sigmoid(y2[:, 0:1] + y2[:, 1:2])                 # (C, 1)
        o_ref[0] = y.astype(o_ref.dtype)


def _choose_spatial_tile(hw, c, itemsize, max_tile_bytes=8 << 20):
    """Largest multiple-of-128 spatial tile that divides HW and keeps one
    (C, T) block under max_tile_bytes (double-buffered tiles stay well inside
    the 64 MiB v7x VMEM and the default scoped limit on v5e/v6e)."""
    if hw % 128 != 0:
        return hw                       # awkward spatial size: monolithic block
    budget_elems = max_tile_bytes // max(1, c * itemsize)
    cap = min(hw, (budget_elems // 128) * 128)
    t = cap
    while t >= 128:
        if hw % t == 0:
            return t
        t -= 128
    return hw


def channel_attention(x_nchw, w1, w2):
    """x_nchw: (N, C, H, W); w1: (Ch, C) = conv1 weight[:, :, 0, 0];
    w2: (C, Ch) = conv2 weight[:, :, 0, 0]. Returns (N, C, 1, 1)."""
    N, C, H, W = x_nchw.shape
    Ch = w1.shape[0]
    HW = H * W

    # Free reshape (H, W are contiguous trailing dims of NCHW) -- no transpose.
    x = x_nchw.reshape(N, C, HW)

    T = _choose_spatial_tile(HW, C, x.dtype.itemsize)
    num_spatial = HW // T if HW % T == 0 else 1

    kernel = functools.partial(_channel_attention_kernel, hw_total=HW)

    out = pl.pallas_call(
        kernel,
        out_shape=jax.ShapeDtypeStruct((N, C, 1), x_nchw.dtype),
        grid_spec=pltpu.PrefetchScalarGridSpec(
            num_scalar_prefetch=0,
            grid=(N, num_spatial),
            in_specs=[
                pl.BlockSpec((1, C, T), lambda b, s: (b, 0, s)),
                pl.BlockSpec((Ch, C), lambda b, s: (0, 0)),
                pl.BlockSpec((C, Ch), lambda b, s: (0, 0)),
            ],
            out_specs=pl.BlockSpec((1, C, 1), lambda b, s: (b, 0, 0)),
            scratch_shapes=[
                pltpu.VMEM((C, 1), jnp.float32),   # running max
                pltpu.VMEM((C, 1), jnp.float32),   # running sum
            ],
        ),
        compiler_params=pltpu.CompilerParams(
            dimension_semantics=("parallel", "arbitrary")),
    )(x, w1, w2)

    return out.reshape(N, C, 1, 1)


def reference(x_nchw, w1, w2):
    # Pure-JAX reference matching the PyTorch forward.
    mx = jnp.max(x_nchw, axis=(2, 3))    # (N, C)
    av = jnp.mean(x_nchw, axis=(2, 3))   # (N, C)

    def fc(p):
        h = jnp.maximum(p @ w1.T, 0.0)   # (N, Ch)
        return h @ w2.T                  # (N, C)

    return jax.nn.sigmoid(fc(mx) + fc(av)).reshape(*mx.shape, 1, 1)


if __name__ == "__main__":
    # Small shapes consistent with the module.
    N, C, H, W = 2, 8, 16, 16
    reduction = 2
    Ch = C // reduction

    key = jax.random.PRNGKey(0)
    kx, k1, k2 = jax.random.split(key, 3)

    x = jax.random.normal(kx, (N, C, H, W), dtype=jnp.float32)

    # Deterministic Conv2d init (kaiming-style, as in init_weight): N(0, sqrt(2/fan_out)),
    # fan_out = kH*kW*out_channels / groups = out_channels for a 1x1 conv.
    w1 = jax.random.normal(k1, (Ch, C), dtype=jnp.float32) * math.sqrt(2.0 / Ch)
    w2 = jax.random.normal(k2, (C, Ch), dtype=jnp.float32) * math.sqrt(2.0 / C)

    out = channel_attention(x, w1, w2)
    jax.block_until_ready(out)

    ref = reference(x, w1, w2)
    assert out.shape == (N, C, 1, 1)
    assert jnp.allclose(out, ref, atol=1e-5, rtol=1e-5), "mismatch vs reference"

    print("KERNEL_OK")
</pallas_src>

<mosaic_0001>
module attributes {stable_mosaic.version = 11 : i64} {
  func.func @_channel_attention_kernel(%arg0: i32, %arg1: i32, %arg2: memref<1x8x256xf32, #tpu.memory_space<vmem>>, %arg3: memref<4x8xf32, #tpu.memory_space<vmem>>, %arg4: memref<8x4xf32, #tpu.memory_space<vmem>>, %arg5: memref<1x8x1xf32, #tpu.memory_space<vmem>>, %arg6: memref<8x1xf32, #tpu.memory_space<vmem>>, %arg7: memref<8x1xf32, #tpu.memory_space<vmem>>) attributes {dimension_semantics = [#tpu.dimension_semantics<parallel>, #tpu.dimension_semantics<arbitrary>], iteration_bounds = array<i64: 2, 1>, scalar_prefetch = 0 : i64, scratch_operands = 2 : i64, tpu.core_type = #tpu.core_type<tc>, window_params = [{transform_indices = @transform_0, window_bounds = array<i64: 1, 8, 256>}, {pipeline_mode = #tpu.pipeline_mode<synchronous>, transform_indices = @transform_1, window_bounds = array<i64: 4, 8>}, {pipeline_mode = #tpu.pipeline_mode<synchronous>, transform_indices = @transform_2, window_bounds = array<i64: 8, 4>}, {transform_indices = @transform_3, window_bounds = array<i64: 1, 8, 1>}]} {
    %c0_i32 = arith.constant 0 : i32
    %0 = arith.cmpi eq, %arg1, %c0_i32 : i32
    %1 = arith.extui %0 : i1 to i32
    %c0_i32_0 = arith.constant 0 : i32
    %2 = arith.cmpi ne, %1, %c0_i32_0 : i32
    scf.if %2 {
      %cst_14 = arith.constant 0xFF800000 : f32
      %18 = vector.broadcast %cst_14 : f32 to vector<8x1xf32>
      %c0_15 = arith.constant 0 : index
      %c0_16 = arith.constant 0 : index
      %19 = vector.load %arg6[%c0_15, %c0_16] : memref<8x1xf32, #tpu.memory_space<vmem>>, vector<8x1xf32>
      tpu.vector_store %arg6[%c0_15, %c0_16], %18 {strides = array<i32>} : memref<8x1xf32, #tpu.memory_space<vmem>>, vector<8x1xf32>,
      %cst_17 = arith.constant 0.000000e+00 : f32
      %20 = vector.broadcast %cst_17 : f32 to vector<8x1xf32>
      %c0_18 = arith.constant 0 : index
      %c0_19 = arith.constant 0 : index
      %21 = vector.load %arg7[%c0_18, %c0_19] : memref<8x1xf32, #tpu.memory_space<vmem>>, vector<8x1xf32>
      tpu.vector_store %arg7[%c0_18, %c0_19], %20 {strides = array<i32>} : memref<8x1xf32, #tpu.memory_space<vmem>>, vector<8x1xf32>,
    } else {
    }
    %c0 = arith.constant 0 : index
    %c0_1 = arith.constant 0 : index
    %c0_2 = arith.constant 0 : index
    %3 = vector.load %arg2[%c0, %c0_1, %c0_2] : memref<1x8x256xf32, #tpu.memory_space<vmem>>, vector<1x8x256xf32>
    %4 = vector.shape_cast %3 : vector<1x8x256xf32> to vector<8x256xf32>
    %cst = arith.constant dense<0xFF800000> : vector<8xf32>
    %5 = vector.multi_reduction <maximumf>, %4, %cst [1] : vector<8x256xf32> to vector<8xf32>
    %6 = vector.shape_cast %5 : vector<8xf32> to vector<8x1xf32>
    %cst_3 = arith.constant dense<0.000000e+00> : vector<8xf32>
    %7 = vector.multi_reduction <add>, %4, %cst_3 [1] : vector<8x256xf32> to vector<8xf32>
    %8 = vector.shape_cast %7 : vector<8xf32> to vector<8x1xf32>
    %c0_4 = arith.constant 0 : index
    %c0_5 = arith.constant 0 : index
    %9 = vector.load %arg6[%c0_4, %c0_5] : memref<8x1xf32, #tpu.memory_space<vmem>>, vector<8x1xf32>
    %10 = arith.maximumf %9, %6 : vector<8x1xf32>
    %c0_6 = arith.constant 0 : index
    %c0_7 = arith.constant 0 : index
    %11 = vector.load %arg6[%c0_6, %c0_7] : memref<8x1xf32, #tpu.memory_space<vmem>>, vector<8x1xf32>
    tpu.vector_store %arg6[%c0_6, %c0_7], %10 {strides = array<i32>} : memref<8x1xf32, #tpu.memory_space<vmem>>, vector<8x1xf32>,
    %c0_8 = arith.constant 0 : index
    %c0_9 = arith.constant 0 : index
    %12 = vector.load %arg7[%c0_8, %c0_9] : memref<8x1xf32, #tpu.memory_space<vmem>>, vector<8x1xf32>
    %13 = arith.addf %12, %8 : vector<8x1xf32>
    %c0_10 = arith.constant 0 : index
    %c0_11 = arith.constant 0 : index
    %14 = vector.load %arg7[%c0_10, %c0_11] : memref<8x1xf32, #tpu.memory_space<vmem>>, vector<8x1xf32>
    tpu.vector_store %arg7[%c0_10, %c0_11], %13 {strides = array<i32>} : memref<8x1xf32, #tpu.memory_space<vmem>>, vector<8x1xf32>,
    %c0_i32_12 = arith.constant 0 : i32
    %15 = arith.cmpi eq, %arg1, %c0_i32_12 : i32
    %16 = arith.extui %15 : i1 to i32
    %c0_i32_13 = arith.constant 0 : i32
    %17 = arith.cmpi ne, %16, %c0_i32_13 : i32
    scf.if %17 {
      %c0_14 = arith.constant 0 : index
      %c0_15 = arith.constant 0 : index
      %18 = vector.load %arg6[%c0_14, %c0_15] : memref<8x1xf32, #tpu.memory_space<vmem>>, vector<8x1xf32>
      %c0_16 = arith.constant 0 : index
      %c0_17 = arith.constant 0 : index
      %19 = vector.load %arg7[%c0_16, %c0_17] : memref<8x1xf32, #tpu.memory_space<vmem>>, vector<8x1xf32>
      %cst_18 = arith.constant 3.906250e-03 : f32
      %20 = vector.broadcast %cst_18 : f32 to vector<8x1xf32>
      %21 = arith.mulf %19, %20 : vector<8x1xf32>
      %22 = tpu.iota {dimensions = array<i32: 1>} : vector<8x2xi32>
      %c0_i32_19 = arith.constant 0 : i32
      %23 = vector.broadcast %c0_i32_19 : i32 to vector<8x2xi32>
      %24 = arith.cmpi eq, %22, %23 : vector<8x2xi32>
      %25 = vector.shape_cast %18 : vector<8x1xf32> to vector<8x1xf32>
      %26 = vector.broadcast %25 : vector<8x1xf32> to vector<8x2xf32>
      %27 = vector.shape_cast %21 : vector<8x1xf32> to vector<8x1xf32>
      %28 = vector.broadcast %27 : vector<8x1xf32> to vector<8x2xf32>
      %29 = arith.select %24, %26, %28 : vector<8x2xi1>, vector<8x2xf32>
      %c0_20 = arith.constant 0 : index
      %c0_21 = arith.constant 0 : index
      %30 = vector.load %arg3[%c0_20, %c0_21] : memref<4x8xf32, #tpu.memory_space<vmem>>, vector<4x8xf32>
      %c0_22 = arith.constant 0 : index
      %c0_23 = arith.constant 0 : index
      %31 = vector.load %arg4[%c0_22, %c0_23] : memref<8x4xf32, #tpu.memory_space<vmem>>, vector<8x4xf32>
      %cst_24 = arith.constant dense<0.000000e+00> : vector<4x2xf32>
      %32 = tpu.matmul %30, %29, %cst_24 {dimension_numbers = #tpu.dot_dimension_numbers<[1], [0], [0], [1], [0, 0, 1, 1], [], []>} : vector<4x8xf32>, vector<8x2xf32>, vector<4x2xf32> -> vector<4x2xf32>
      %cst_25 = arith.constant 0.000000e+00 : f32
      %33 = vector.broadcast %cst_25 : f32 to vector<4x2xf32>
      %34 = arith.maximumf %32, %33 : vector<4x2xf32>
      %cst_26 = arith.constant dense<0.000000e+00> : vector<8x2xf32>
      %35 = tpu.matmul %31, %34, %cst_26 {dimension_numbers = #tpu.dot_dimension_numbers<[1], [0], [0], [1], [0, 0, 1, 1], [], []>} : vector<8x4xf32>, vector<4x2xf32>, vector<8x2xf32> -> vector<8x2xf32>
      %36 = vector.extract_strided_slice %35 {offsets = [0, 0], sizes = [8, 1], strides = [1, 1]} : vector<8x2xf32> to vector<8x1xf32>
      %37 = vector.extract_strided_slice %35 {offsets = [0, 1], sizes = [8, 1], strides = [1, 1]} : vector<8x2xf32> to vector<8x1xf32>
      %38 = arith.addf %36, %37 : vector<8x1xf32>
      %39 = arith.negf %38 : vector<8x1xf32>
      %40 = math.exp %39 : vector<8x1xf32>
      %cst_27 = arith.constant 1.000000e+00 : f32
      %41 = vector.broadcast %cst_27 : f32 to vector<8x1xf32>
      %42 = arith.addf %41, %40 : vector<8x1xf32>
      %43 = arith.divf %41, %42 : vector<8x1xf32>
      %c0_28 = arith.constant 0 : index
      %c0_29 = arith.constant 0 : index
      %c0_30 = arith.constant 0 : index
      %44 = vector.load %arg5[%c0_28, %c0_29, %c0_30] : memref<1x8x1xf32, #tpu.memory_space<vmem>>, vector<1x8x1xf32>
      %45 = vector.shape_cast %44 : vector<1x8x1xf32> to vector<8x1xf32>
      %46 = vector.shape_cast %43 : vector<8x1xf32> to vector<1x8x1xf32>
      tpu.vector_store %arg5[%c0_28, %c0_29, %c0_30], %46 {strides = array<i32>} : memref<1x8x1xf32, #tpu.memory_space<vmem>>, vector<1x8x1xf32>,
    } else {
    }
    return
  }
  func.func @transform_0(%arg0: i32, %arg1: i32) -> (i32, i32, i32) {
    %c0_i32 = arith.constant 0 : i32
    %c0_i32_0 = arith.constant 0 : i32
    return %arg0, %c0_i32, %arg1 : i32, i32, i32
  }
  func.func @transform_1(%arg0: i32, %arg1: i32) -> (i32, i32) {
    %c0_i32 = arith.constant 0 : i32
    %c0_i32_0 = arith.constant 0 : i32
    %c0_i32_1 = arith.constant 0 : i32
    return %c0_i32, %c0_i32_0 : i32, i32
  }
  func.func @transform_2(%arg0: i32, %arg1: i32) -> (i32, i32) {
    %c0_i32 = arith.constant 0 : i32
    %c0_i32_0 = arith.constant 0 : i32
    %c0_i32_1 = arith.constant 0 : i32
    return %c0_i32, %c0_i32_0 : i32, i32
  }
  func.func @transform_3(%arg0: i32, %arg1: i32) -> (i32, i32, i32) {
    %c0_i32 = arith.constant 0 : i32
    %c0_i32_0 = arith.constant 0 : i32
    %c0_i32_1 = arith.constant 0 : i32
    return %arg0, %c0_i32, %c0_i32_0 : i32, i32, i32
  }
}

</mosaic_0001>

<llo_original>
// kernel: tpu_custom_call.1
$region0: #{tpu_custom_call.1}
  #allocation0 [shape = 'u32[]', space=smem, size = 0x4, offset = 0x4, fixed_abs, tag = 'smem constant byte address 0x4 - core index']
  #allocation1 [shape = 'u32[144,128]{1,0:T(1,128)}', space=vmem, size = 0x12000, scoped, tag = 'internal scratch']
  #allocation2 [shape = 'f32[8,1]{1,0:T(8,128)}', space=vmem, size = 0x1000, scoped, tag = 'scratch operand']
  #allocation3 [shape = 'f32[8,1]{1,0:T(8,128)}', space=vmem, size = 0x1000, scoped, tag = 'scratch operand']
  %s0 = inlined_call_operand.hbm [shape: f32[2,8,256], index: 0, kind: input, shape index: {}]
  %s1 = inlined_call_operand.vmem [shape: f32[4,8], index: 1, kind: input, shape index: {}]
  %s2 = inlined_call_operand.vmem [shape: f32[8,4], index: 2, kind: input, shape index: {}]
  %s3 = inlined_call_operand.vmem [shape: f32[2,8,1], index: 3, kind: output, shape index: {}]
  %s4 = sld [smem:[#allocation0]]
  $region57: #{tpu_custom_call.1} parent=0
    _
  %s6 = ssub.s32 1, %s4
  %s7 = scalar_select 0, %s6, %s4
  $region1: #{tpu_custom_call.1} parent=0
    #allocation4 [shape = 'u8[16384]{0}', space=vmem, size = 0x4000, scoped, tag = 'input window, operand 0']
    #allocation5 [shape = 's32[2]{0}', space=sflag, size = 0x8, scoped, tag = 'scoped memory for tpu_custom_call.1']
    %8 = vsyncpa [#allocation5], 0
    %s9 = scalar_lea.sflag [#allocation5], 1
    %10 = vsyncpa %s9, 0
    loop: start=0, step=1, limit=4
    $region2: #{tpu_custom_call.1} parent=1 // loop_pre_header
      _
    $region3: #{tpu_custom_call.1} parent=1 // loop_header
      %s12 = sphi 0, %s16
      %p13 = scmp.ge.s32.totalorder %s12, 4
      %s19 = sphi 0, %s31
      %s20 = sphi 0, %s27
      %s21 = sphi 0, %s19
      %s22 = sphi 0, %s20
      %s23 = sphi 0, %s21
      %s24 = sphi 0, %s22
      %s36 = sphi 0, %s38
      %s39 = sphi 0, %s36
      %s40 = sphi 0, %s39
      %s56 = sphi 0, %s40
      %s60 = sphi 0, %s60
      %s62 = sphi 0, %s60
      %s63 = sphi 0, %s62
      %s77 = sphi 0, %s63
      %s81 = sphi 0, %s81
      %s83 = sphi 0, %s81
      %s84 = sphi 0, %s83
      %s98 = sphi 0, %s84
      %s104 = sphi 0, %s106
      %s107 = sphi 0, %s104
      %s108 = sphi 0, %s107
      %s124 = sphi 0, %s108
    $region4: #{tpu_custom_call.1} parent=1 // loop_header_branch
      %15 = sbr.rel (%p13) target = $region8
    $region5: #{tpu_custom_call.1} parent=1 // loop_body
      %s17 = ssub.s32 %s12, 1
      %s18 = ssub.s32 %s12, 2
      %s25 = sadd.s32 1, %s20
      %p26 = scmp.ge.s32.totalorder %s25, 1
      %s27 = scalar_select %p26, 0, %s25
      %s28 = sadd.s32 1, %s19
      %s29 = scalar_select %p26, %s28, %s19
      %p30 = scmp.ge.s32.totalorder %s29, 2
      %s31 = scalar_select %p30, 0, %s29
      %s32 = ssub.s32 %s19, %s31
      %s33 = ssub.s32 %s20, %s27
      %s34 = sor.u32 %s32, %s33
      %p35 = scmp.eq.s32.totalorder %s34, 0
      %s37 = sadd.s32 %s36, 1
      %s38 = scalar_select %p35, %s36, %s37
      %p41 = pneg %p35
      %p42 = scmp.eq.s32.totalorder %s12, 1
      %p43 = por %p41, %p42
      %p44 = scmp.ne.s32.totalorder %s36, %s39
      %p45 = scmp.eq.s32.totalorder %s12, 0
      %p46 = por %p44, %p45
      %p47 = scmp.ne.s32.totalorder %s36, %s39
      %p48 = scmp.eq.s32.totalorder %s17, 1
      %p49 = por %p47, %p48
      %p50 = scmp.ne.s32.totalorder %s39, %s40
      %p51 = scmp.eq.s32.totalorder %s17, 0
      %p52 = por %p50, %p51
      %p53 = scmp.ne.s32.totalorder %s39, %s40
      %p54 = scmp.eq.s32.totalorder %s18, 1
      %p55 = por %p53, %p54
      %p57 = scmp.ne.s32.totalorder %s40, %s56
      %p58 = scmp.eq.s32.totalorder %s18, 0
      %p59 = por %p57, %p58
      %s61 = sadd.s32 %s60, 1
      %p64 = scmp.eq.s32.totalorder %s12, 1
      %p65 = scmp.ne.s32.totalorder %s60, %s62
      %p66 = scmp.eq.s32.totalorder %s12, 0
      %p67 = por %p65, %p66
      %p68 = scmp.ne.s32.totalorder %s60, %s62
      %p69 = scmp.eq.s32.totalorder %s17, 1
      %p70 = por %p68, %p69
      %p71 = scmp.ne.s32.totalorder %s62, %s63
      %p72 = scmp.eq.s32.totalorder %s17, 0
      %p73 = por %p71, %p72
      %p74 = scmp.ne.s32.totalorder %s62, %s63
      %p75 = scmp.eq.s32.totalorder %s18, 1
      %p76 = por %p74, %p75
      %p78 = scmp.ne.s32.totalorder %s63, %s77
      %p79 = scmp.eq.s32.totalorder %s18, 0
      %p80 = por %p78, %p79
      %s82 = sadd.s32 %s81, 1
      %p85 = scmp.eq.s32.totalorder %s12, 1
      %p86 = scmp.ne.s32.totalorder %s81, %s83
      %p87 = scmp.eq.s32.totalorder %s12, 0
      %p88 = por %p86, %p87
      %p89 = scmp.ne.s32.totalorder %s81, %s83
      %p90 = scmp.eq.s32.totalorder %s17, 1
      %p91 = por %p89, %p90
      %p92 = scmp.ne.s32.totalorder %s83, %s84
      %p93 = scmp.eq.s32.totalorder %s17, 0
      %p94 = por %p92, %p93
      %p95 = scmp.ne.s32.totalorder %s83, %s84
      %p96 = scmp.eq.s32.totalorder %s18, 1
      %p97 = por %p95, %p96
      %p99 = scmp.ne.s32.totalorder %s84, %s98
      %p100 = scmp.eq.s32.totalorder %s18, 0
      %p101 = por %p99, %p100
      %s102 = ssub.s32 %s19, %s31
      %p103 = scmp.eq.s32.totalorder %s102, 0
      %s105 = sadd.s32 %s104, 1
      %s106 = scalar_select %p103, %s104, %s105
      %p109 = pneg %p103
      %p110 = scmp.eq.s32.totalorder %s12, 1
      %p111 = por %p109, %p110
      %p112 = scmp.ne.s32.totalorder %s104, %s107
      %p113 = scmp.eq.s32.totalorder %s12, 0
      %p114 = por %p112, %p113
      %p115 = scmp.ne.s32.totalorder %s104, %s107
      %p116 = scmp.eq.s32.totalorder %s17, 1
      %p117 = por %p115, %p116
      %p118 = scmp.ne.s32.totalorder %s107, %s108
      %p119 = scmp.eq.s32.totalorder %s17, 0
      %p120 = por %p118, %p119
      %p121 = scmp.ne.s32.totalorder %s107, %s108
      %p122 = scmp.eq.s32.totalorder %s18, 1
      %p123 = por %p121, %p122
      %p125 = scmp.ne.s32.totalorder %s108, %s124
      %p126 = scmp.eq.s32.totalorder %s18, 0
      %p127 = por %p125, %p126
      %p128 = scmp.le.s32.totalorder 1, %s12
      %p129 = scmp.lt.s32.totalorder %s12, 3
      %p130 = pnand %p128, %p129
      %p131 = pneg %p130
      // Predicated region
      $region9: #{tpu_custom_call.1} parent=5 // pred_check
        _
      $region10: #{tpu_custom_call.1} parent=5 // pred_check_branch
        %133 = sbr.rel (%p130) target = $region12
      $region11: #{tpu_custom_call.1} parent=5 // pred_region
        %s134 = ssub.s32 %s12, 1
        // Predicated region
        $region13: #{tpu_custom_call.1} parent=11 // pred_check
          %p135 = pneg %p73
        $region14: #{tpu_custom_call.1} parent=11 // pred_check_branch
          %137 = sbr.rel (%p135) target = $region16
        $region15: #{tpu_custom_call.1} parent=11 // pred_region
          _
        $region16: #{tpu_custom_call.1} parent=11 // pred_fallthru
          _
        // Predicated region
        $region17: #{tpu_custom_call.1} parent=11 // pred_check
          %p138 = pneg %p94
        $region18: #{tpu_custom_call.1} parent=11 // pred_check_branch
          %140 = sbr.rel (%p138) target = $region20
        $region19: #{tpu_custom_call.1} parent=11 // pred_region
          _
        $region20: #{tpu_custom_call.1} parent=11 // pred_fallthru
          _
      $region12: #{tpu_custom_call.1} parent=5 // pred_fallthru
        _
      %p141 = scmp.lt.s32.totalorder %s12, 2
      // Predicated region
      $region21: #{tpu_custom_call.1} parent=5 // pred_check
        %p142 = pneg %p141
      $region22: #{tpu_custom_call.1} parent=5 // pred_check_branch
        %144 = sbr.rel (%p142) target = $region24
      $region23: #{tpu_custom_call.1} parent=5 // pred_region
        // Predicated region
        $region25: #{tpu_custom_call.1} parent=23 // pred_check
          %p145 = pneg %p46
        $region26: #{tpu_custom_call.1} parent=23 // pred_check_branch
          %147 = sbr.rel (%p145) target = $region28
        $region27: #{tpu_custom_call.1} parent=23 // pred_region
          %s148 = sand.u32 %s36, 1
          %s149 = scalar_lea.sflag [#allocation5], %s148
          %s150 = sand.u32 %s36, 1
          %s151 = smul.addr %s150, 16
          %s152 = scalar_lea.vmem [#allocation4], %s151
          %s153 = smul.u32 2, %s20
          %s155 = ssub.s32 256, 256
          %156 = vsyncadd %s149, %s155
          %s157 = smul.addr %s19, 2
          %s158 = sadd.s32 %s153, %s157
          %s159 = smul.addr %s158, 128
          %s160 = scalar_lea.hbm %s0, %s159
          %s162 = sshll.u32 %s152, 4
          %s163 = int_to_ptr.vmem [resolvable:$true] %s162
          %165 = dma.hbm_to_vmem [thread:$0]  %s160, 256, %s163, %s149
        $region28: #{tpu_custom_call.1} parent=23 // pred_fallthru
          _
      $region24: #{tpu_custom_call.1} parent=5 // pred_fallthru
        _
      %p166 = scmp.le.s32.totalorder 1, %s12
      %p167 = scmp.lt.s32.totalorder %s12, 3
      %p168 = pnand %p166, %p167
      %p169 = pneg %p168
      // Predicated region
      $region29: #{tpu_custom_call.1} parent=5 // pred_check
        _
      $region30: #{tpu_custom_call.1} parent=5 // pred_check_branch
        %171 = sbr.rel (%p168) target = $region32
      $region31: #{tpu_custom_call.1} parent=5 // pred_region
        %s172 = ssub.s32 %s12, 1
        %s173 = sand.u32 %s39, 1
        %s174 = scalar_lea.sflag [#allocation5], %s173
        %s175 = sand.u32 %s39, 1
        %s176 = smul.addr %s175, 16
        %s177 = scalar_lea.vmem [#allocation4], %s176
        // Predicated region
        $region33: #{tpu_custom_call.1} parent=31 // pred_check
          %p178 = pneg %p52
        $region34: #{tpu_custom_call.1} parent=31 // pred_check_branch
          %180 = sbr.rel (%p178) target = $region36
        $region35: #{tpu_custom_call.1} parent=31 // pred_region
          %181 = dma.done %s174, 256
        $region36: #{tpu_custom_call.1} parent=31 // pred_fallthru
          _
        %s182 = sand.u32 %s39, 1
        %s183 = scalar_lea.sflag [#allocation5], %s182
        %s184 = sand.u32 %s39, 1
        %s185 = smul.addr %s184, 16
        %s186 = scalar_lea.vmem [#allocation4], %s185
        %p187 = pneg %p52
        %p188 = pneg %p49
        %p189 = pneg %p73
        %p190 = pneg %p70
        %p191 = pneg %p94
        %p192 = pneg %p91
        %p193 = pneg %p120
        %p194 = pneg %p117
        %p195 = scmp.lt.s32.totalorder %s21, 1
        %s196 = scalar_select %p195, %s21, 1
        %s197 = smul.addr %s196, 8
        %s198 = scalar_lea.vmem %s3, %s197
        %s199 = smul.u32 2, %s22
        %p200 = scmp.lt.s32.totalorder %s21, 1
        %s201 = scalar_select %p200, %s21, 1
        %s202 = smul.addr %s201, 8
        %s203 = scalar_lea.vmem %s3, %s202
        %p204 = scmp.eq.s32.totalorder %s22, 0
        // Predicated region
        $region37: #{tpu_custom_call.1} parent=31 // pred_check
          %p205 = pneg %p204
        $region38: #{tpu_custom_call.1} parent=31 // pred_check_branch
          %207 = sbr.rel (%p205) target = $region40
        $region39: #{tpu_custom_call.1} parent=31 // pred_region
          %vm208 = vcmask 7168
          %209 = vst.msk [vmem:[#allocation2] sm:$0xff] %vm208, -inf
          %210 = vst.msk [vmem:[#allocation3] sm:$0xff] %vm208, 0.0
        $region40: #{tpu_custom_call.1} parent=31 // pred_fallthru
          _
        %v211 = vld [vmem:[%s177] sm:$0xff]
        %v212 = vld [vmem:[%s177 + $0x8] sm:$0xff]
        %v213 = vmax.f32 %v211, %v212
        %214 = vmax.xlane.f32.xlu0 %v213
        %v215 = vpop.xlane.xlu0 %214
        %v216 = vadd.f32 %v211, %v212
        %217 = vadd.xlane.f32.xlu0 %v216
        %v218 = vpop.xlane.xlu0 %217
        %v219 = vld [vmem:[#allocation2] sm:$0xff]
        %v220 = vmax.f32 %v219, %v215
        %vm221 = vcmask 7168
        %222 = vst.msk [vmem:[#allocation2] sm:$0xff] %vm221, %v220
        %v223 = vld [vmem:[#allocation3] sm:$0xff]
        %v224 = vadd.f32 %v223, %v218
        %225 = vst.msk [vmem:[#allocation3] sm:$0xff] %vm221, %v224
        // Predicated region
        $region41: #{tpu_custom_call.1} parent=31 // pred_check
          %p226 = pneg %p204
        $region42: #{tpu_custom_call.1} parent=31 // pred_check_branch
          %228 = sbr.rel (%p226) target = $region44
        $region43: #{tpu_custom_call.1} parent=31 // pred_region
          %v229 = vld [vmem:[#allocation2] sm:$0xff]
          %v230 = vld [vmem:[#allocation3] sm:$0xff]
          %v231 = vmul.f32 %v230, 0.00390625
          %v232 = vlaneseq
          %v233 = vand.u32 %v232, 127
          %vm234 = vcmp.eq.s32.totalorder %v233, 0
          %236 = vset.pattern.permute.xlu0 0
          %237 = vperm.xlu0 %236, %v229
          %v238 = vpop.permute.xlu0 %237
          %241 = vset.pattern.permute.xlu0 0
          %242 = vperm.xlu0 %241, %v231
          %v243 = vpop.permute.xlu0 %242
          %v245 = vsel %vm234, %v238, %v243
          %v246 = vld [vmem:[%s1] sm:$0xf]
          %v247 = vld [vmem:[%s2] sm:$0xff]
          %vm248 = vcmask 64512
          %v250 = vsel %vm248, %v246, 0
          %252 = vmatprep.subr.mxu0 0.0
          %253 = vmatpush1.msra.mxu0 %v245
          %254 = vmatprep.subr.mxu0 0.0
          %255 = vmatpush1.msra.mxu0 0.0
          %256 = vmatprep.subr.mxu0 0.0
          %257 = vmatpush1.msra.mxu0 0.0
          %258 = vmatprep.subr.mxu0 0.0
          %259 = vmatpush1.msra.mxu0 0.0
          %260 = vmatprep.subr.mxu0 0.0
          %261 = vmatpush1.msra.mxu0 0.0
          %262 = vmatprep.subr.mxu0 0.0
          %263 = vmatpush1.msra.mxu0 0.0
          %264 = vmatprep.subr.mxu0 0.0
          %265 = vmatpush1.msra.mxu0 0.0
          %266 = vmatprep.subr.mxu0 0.0
          %267 = vmatpush1.msra.mxu0 0.0
          %268 = vmatprep.subr.mxu0 0.0
          %269 = vmatpush1.msra.mxu0 0.0
          %270 = vmatprep.subr.mxu0 0.0
          %271 = vmatpush1.msra.mxu0 0.0
          %272 = vmatprep.subr.mxu0 0.0
          %273 = vmatpush1.msra.mxu0 0.0
          %274 = vmatprep.subr.mxu0 0.0
          %275 = vmatpush1.msra.mxu0 0.0
          %276 = vmatprep.subr.mxu0 0.0
          %277 = vmatpush1.msra.mxu0 0.0
          %278 = vmatprep.subr.mxu0 0.0
          %279 = vmatpush1.msra.mxu0 0.0
          %280 = vmatprep.subr.mxu0 0.0
          %281 = vmatpush1.msra.mxu0 0.0
          %282 = vmatprep.subr.mxu0 0.0
          %283 = vmatpush1.msra.mxu0 0.0
          %284 = vmatprep.subr.mxu0 0.0
          %285 = vmatpush1.msra.mxu0 0.0
          %286 = vmatprep.subr.mxu0 0.0
          %287 = vmatpush1.msra.mxu0 0.0
          %288 = vmatprep.subr.mxu0 0.0
          %289 = vmatpush1.msra.mxu0 0.0
          %290 = vmatprep.subr.mxu0 0.0
          %291 = vmatpush1.msra.mxu0 0.0
          %292 = vmatprep.subr.mxu0 0.0
          %293 = vmatpush1.msra.mxu0 0.0
          %294 = vmatprep.subr.mxu0 0.0
          %295 = vmatpush1.msra.mxu0 0.0
          %296 = vmatprep.subr.mxu0 0.0
          %297 = vmatpush1.msra.mxu0 0.0
          %298 = vmatprep.subr.mxu0 0.0
          %299 = vmatpush1.msra.mxu0 0.0
          %300 = vmatprep.subr.mxu0 0.0
          %301 = vmatpush1.msra.mxu0 0.0
          %302 = vmatprep.subr.mxu0 0.0
          %303 = vmatpush1.msra.mxu0 0.0
          %304 = vmatprep.subr.mxu0 0.0
          %305 = vmatpush1.msra.mxu0 0.0
          %306 = vmatprep.subr.mxu0 0.0
          %307 = vmatpush1.msra.mxu0 0.0
          %308 = vmatprep.subr.mxu0 0.0
          %309 = vmatpush1.msra.mxu0 0.0
          %310 = vmatprep.subr.mxu0 0.0
          %311 = vmatpush1.msra.mxu0 0.0
          %312 = vmatprep.subr.mxu0 0.0
          %313 = vmatpush1.msra.mxu0 0.0
          %314 = vmatprep.subr.mxu0 0.0
          %315 = vmatpush1.msra.mxu0 0.0
          %316 = vmatprep.mubr.f32.mxu0 0.0
          %317 = vmatmul.mubr.f32.gmra.mrb[0].mxu0 %v250
          %v318 = vpop.f32.mrb[0].mxu0
          %v319 = vadd.f32 0.0, %v318
          %v320 = vpop.f32.mrb[0].mxu0
          %321 = vdwg.mxu0
          %v322 = vmax.f32 %v319, 0.0
          %vm323 = vcmask 31744
          %v325 = vsel %vm323, %v247, 0
          %vm327 = vcmask 1043456
          %v329 = vsel %vm327, %v322, 0
          %331 = vmatprep.subr.mxu0 0.0
          %332 = vmatpush1.msra.mxu0 %v329
          %333 = vmatprep.subr.mxu0 0.0
          %334 = vmatpush1.msra.mxu0 0.0
          %335 = vmatprep.subr.mxu0 0.0
          %336 = vmatpush1.msra.mxu0 0.0
          %337 = vmatprep.subr.mxu0 0.0
          %338 = vmatpush1.msra.mxu0 0.0
          %339 = vmatprep.subr.mxu0 0.0
          %340 = vmatpush1.msra.mxu0 0.0
          %341 = vmatprep.subr.mxu0 0.0
          %342 = vmatpush1.msra.mxu0 0.0
          %343 = vmatprep.subr.mxu0 0.0
          %344 = vmatpush1.msra.mxu0 0.0
          %345 = vmatprep.subr.mxu0 0.0
          %346 = vmatpush1.msra.mxu0 0.0
          %347 = vmatprep.subr.mxu0 0.0
          %348 = vmatpush1.msra.mxu0 0.0
          %349 = vmatprep.subr.mxu0 0.0
          %350 = vmatpush1.msra.mxu0 0.0
          %351 = vmatprep.subr.mxu0 0.0
          %352 = vmatpush1.msra.mxu0 0.0
          %353 = vmatprep.subr.mxu0 0.0
          %354 = vmatpush1.msra.mxu0 0.0
          %355 = vmatprep.subr.mxu0 0.0
          %356 = vmatpush1.msra.mxu0 0.0
          %357 = vmatprep.subr.mxu0 0.0
          %358 = vmatpush1.msra.mxu0 0.0
          %359 = vmatprep.subr.mxu0 0.0
          %360 = vmatpush1.msra.mxu0 0.0
          %361 = vmatprep.subr.mxu0 0.0
          %362 = vmatpush1.msra.mxu0 0.0
          %363 = vmatprep.subr.mxu0 0.0
          %364 = vmatpush1.msra.mxu0 0.0
          %365 = vmatprep.subr.mxu0 0.0
          %366 = vmatpush1.msra.mxu0 0.0
          %367 = vmatprep.subr.mxu0 0.0
          %368 = vmatpush1.msra.mxu0 0.0
          %369 = vmatprep.subr.mxu0 0.0
          %370 = vmatpush1.msra.mxu0 0.0
          %371 = vmatprep.subr.mxu0 0.0
          %372 = vmatpush1.msra.mxu0 0.0
          %373 = vmatprep.subr.mxu0 0.0
          %374 = vmatpush1.msra.mxu0 0.0
          %375 = vmatprep.subr.mxu0 0.0
          %376 = vmatpush1.msra.mxu0 0.0
          %377 = vmatprep.subr.mxu0 0.0
          %378 = vmatpush1.msra.mxu0 0.0
          %379 = vmatprep.subr.mxu0 0.0
          %380 = vmatpush1.msra.mxu0 0.0
          %381 = vmatprep.subr.mxu0 0.0
          %382 = vmatpush1.msra.mxu0 0.0
          %383 = vmatprep.subr.mxu0 0.0
          %384 = vmatpush1.msra.mxu0 0.0
          %385 = vmatprep.subr.mxu0 0.0
          %386 = vmatpush1.msra.mxu0 0.0
          %387 = vmatprep.subr.mxu0 0.0
          %388 = vmatpush1.msra.mxu0 0.0
          %389 = vmatprep.subr.mxu0 0.0
          %390 = vmatpush1.msra.mxu0 0.0
          %391 = vmatprep.subr.mxu0 0.0
          %392 = vmatpush1.msra.mxu0 0.0
          %393 = vmatprep.subr.mxu0 0.0
          %394 = vmatpush1.msra.mxu0 0.0
          %395 = vmatprep.mubr.f32.mxu0 0.0
          %396 = vmatmul.mubr.f32.gmra.mrb[0].mxu0 %v325
          %v397 = vpop.f32.mrb[0].mxu0
          %v398 = vadd.f32 0.0, %v397
          %v399 = vpop.f32.mrb[0].mxu0
          %400 = vdwg.mxu0
          %402 = vrot.lane.b32.xlu0 %v398, 127
          %v403 = vpop.permute.xlu0 %402
          %v405 = vadd.f32 %v398, %v403
          %v406 = vxor.u32 %v405, 2147483648
          %v407 = vmul.f32 %v406, 1.442695
          %v408 = vpow.pop %v407
          %v409 = vadd.f32 %v408, 1.0
          %v410 = vrcp.pop %v409
          %v411 = vmul.f32 1.0, %v410
          %412 = vst.msk [vmem:[%s203] sm:$0xff] %vm221, %v411
        $region44: #{tpu_custom_call.1} parent=31 // pred_fallthru
          _
        %p413 = scmp.lt.s32.totalorder %s21, 1
        %s414 = scalar_select %p413, %s21, 1
        %s415 = smul.addr %s414, 8
        %s416 = scalar_lea.vmem %s3, %s415
        // Predicated region
        $region45: #{tpu_custom_call.1} parent=31 // pred_check
          %p417 = pneg %p117
        $region46: #{tpu_custom_call.1} parent=31 // pred_check_branch
          %419 = sbr.rel (%p417) target = $region48
        $region47: #{tpu_custom_call.1} parent=31 // pred_region
          _
        $region48: #{tpu_custom_call.1} parent=31 // pred_fallthru
          _
      $region32: #{tpu_custom_call.1} parent=5 // pred_fallthru
        _
      %p420 = scmp.le.s32.totalorder 2, %s12
      // Predicated region
      $region49: #{tpu_custom_call.1} parent=5 // pred_check
        %p421 = pneg %p420
      $region50: #{tpu_custom_call.1} parent=5 // pred_check_branch
        %423 = sbr.rel (%p421) target = $region52
      $region51: #{tpu_custom_call.1} parent=5 // pred_region
        %s424 = ssub.s32 %s12, 2
        // Predicated region
        $region53: #{tpu_custom_call.1} parent=51 // pred_check
          %p425 = pneg %p123
        $region54: #{tpu_custom_call.1} parent=51 // pred_check_branch
          %427 = sbr.rel (%p425) target = $region56
        $region55: #{tpu_custom_call.1} parent=51 // pred_region
          %p428 = scmp.lt.s32.totalorder %s23, 1
          %s429 = scalar_select %p428, %s23, 1
          %s430 = smul.addr %s429, 8
          %s431 = scalar_lea.vmem %s3, %s430
        $region56: #{tpu_custom_call.1} parent=51 // pred_fallthru
          _
      $region52: #{tpu_custom_call.1} parent=5 // pred_fallthru
        _
    $region6: #{tpu_custom_call.1} parent=1 // loop_footer
      %s16 = sadd.s32 1, %s12
    $region7: #{tpu_custom_call.1} parent=1 // loop_footer_branch
      %11 = sbr.rel target = $region3
    $region8: #{tpu_custom_call.1} parent=1 // loop_exit
      _
    %432 = vsyncpa [#allocation5], 1
    %s433 = scalar_lea.sflag [#allocation5], 1
    %434 = vsyncpa %s433, 1

</llo_original>
